<compile_context>
chip_gen: v7x
topology: tpu7x:2x2x1
jax: 0.10.0
libtpu: 0.0.40
codegen_flags: <defaults>
</compile_context>

<pallas_src>
import functools

import jax
import jax.numpy as jnp
from jax import lax
from jax.experimental import pallas as pl
from jax.experimental.pallas import tpu as pltpu


# --------------------------------------------------------------------------- #
# Sizing helpers
# --------------------------------------------------------------------------- #
@functools.lru_cache(maxsize=None)
def _vmem_plan():
    """Return (vmem_limit_bytes, block_budget_bytes) sized per TPU generation.

    v5e / v6e (128 MiB VMEM per core) -> 64 MiB scoped limit, ~8 MiB blocks.
    v7x (64 MiB VMEM per core)        -> 48 MiB scoped limit, ~5 MiB blocks.
    The conservative (v7x-sized) plan is used when detection fails.
    """
    cap = None
    try:
        cap = int(getattr(pltpu.get_tpu_info(), "vmem_capacity_bytes", 0)) or None
    except Exception:
        cap = None
    if cap is None:
        try:
            kind = jax.devices()[0].device_kind.lower()
        except Exception:
            kind = ""
        if "v5" in kind or "v6" in kind:
            cap = 128 * 1024 * 1024
        else:
            cap = 64 * 1024 * 1024
    if cap >= 128 * 1024 * 1024:
        return 64 * 1024 * 1024, 8 * 1024 * 1024
    return 48 * 1024 * 1024, 5 * 1024 * 1024


def _choose_tiles(B, C, HW, itemsize, block_budget):
    """Pick (b_blk, n_b, hw_tile, n_hw) for streaming a (B, C, HW) array.

    * b_blk divides B and, when B >= 2, leaves at least two batch blocks so a
      leading "parallel" grid axis can be split across v7x's two TensorCores.
    * hw_tile is a multiple of 128 (or the full HW when HW < 128) sized so one
      (b_blk, C, hw_tile) block stays near `block_budget` bytes.
    """
    hw_min = 128 if HW >= 128 else HW
    row_bytes = C * hw_min * itemsize

    b_cap = B // 2 if B >= 2 else 1
    b_blk = 1
    for cand in range(2, b_cap + 1):
        if B % cand == 0 and cand * row_bytes <= block_budget:
            b_blk = cand
    n_b = B // b_blk

    if HW < 128:
        hw_tile = HW
    else:
        per_lane = b_blk * C * itemsize
        budget_lanes = max(128, (block_budget // per_lane) // 128 * 128)
        budget_lanes = min(budget_lanes, 256 * 128)   # bound in-kernel unroll
        hw_tile = min(budget_lanes, (HW // 128) * 128)
    n_hw = pl.cdiv(HW, hw_tile)
    return b_blk, n_b, hw_tile, n_hw


# --------------------------------------------------------------------------- #
# Kernels
# --------------------------------------------------------------------------- #
def _fused_kernel(x_ref, w1t_ref, b1_ref, w2t_ref, b2_ref, a_ref, o_ref, *,
                  inv_hw):
    """Whole SE block in one kernel (x resident in VMEM): pool + MLP + scale."""
    x = x_ref[...]                                               # (B, C, HW)
    y = jnp.sum(x.astype(jnp.float32), axis=-1) * inv_hw         # (B, C) mean
    h = jnp.dot(y, w1t_ref[...],
                preferred_element_type=jnp.float32) + b1_ref[...]
    slope = a_ref[0]
    h = jnp.where(h >= 0, h, slope * h)                          # PReLU
    s = jnp.dot(h, w2t_ref[...],
                preferred_element_type=jnp.float32) + b2_ref[...]
    s = jax.nn.sigmoid(s)                                        # (B, C)
    o_ref[...] = (x * s[:, :, None]).astype(o_ref.dtype)


def _pool_mlp_kernel(x_ref, w1t_ref, b1_ref, w2t_ref, b2_ref, a_ref,
                     s_ref, acc_ref, *, inv_hw, hw_tile, chunk, tail_valid):
    """Streaming pass 1: spatial mean + excitation MLP.

    grid = (n_b, n_hw): axis 0 (batch blocks) is "parallel", axis 1 (HW tiles)
    is the "arbitrary" reduction axis.  Accumulation uses static 128-lane
    chunks into a lane-shaped scratch (pure VPU adds per tile); the single
    cross-lane reduce and the MLP run once per b-block at the final tile.
    """
    t = pl.program_id(1)
    n_hw = pl.num_programs(1)
    n_chunks = hw_tile // chunk

    @pl.when(t == 0)
    def _():
        acc_ref[...] = jnp.zeros_like(acc_ref)

    def accumulate(valid):
        # `valid` is a static (trace-time) count of in-bounds lanes in this tile.
        part = acc_ref[...]
        for j in range(n_chunks):
            lo = j * chunk
            if lo >= valid:
                break
            xj = x_ref[:, :, lo:lo + chunk].astype(jnp.float32)
            if lo + chunk > valid:                 # static ragged-chunk mask
                lane = lax.broadcasted_iota(jnp.int32, xj.shape, 2)
                xj = jnp.where(lane < (valid - lo), xj, 0.0)
            part = part + xj
        acc_ref[...] = part

    if tail_valid == hw_tile:                      # HW divides evenly: no mask
        accumulate(hw_tile)
    else:
        @pl.when(t < n_hw - 1)
        def _():
            accumulate(hw_tile)

        @pl.when(t == n_hw - 1)
        def _():
            accumulate(tail_valid)

    @pl.when(t == n_hw - 1)
    def _():
        y = jnp.sum(acc_ref[...], axis=-1) * inv_hw              # (b_blk, C)
        h = jnp.dot(y, w1t_ref[...],
                    preferred_element_type=jnp.float32) + b1_ref[...]
        slope = a_ref[0]
        h = jnp.where(h >= 0, h, slope * h)                      # PReLU
        s = jnp.dot(h, w2t_ref[...],
                    preferred_element_type=jnp.float32) + b2_ref[...]
        s = jax.nn.sigmoid(s)                                    # (b_blk, C)
        s_ref[...] = s[:, None, :].astype(s_ref.dtype)           # (b_blk, 1, C)


def _scale_kernel(x_ref, s_ref, o_ref):
    """Streaming pass 2: out = x * s, with s a (C, 1) column per batch."""
    o_ref[...] = (x_ref[...] * s_ref[...]).astype(o_ref.dtype)


# --------------------------------------------------------------------------- #
# Wrapper
# --------------------------------------------------------------------------- #
def se_block(x, w1, b1, prelu_a, w2, b2, *, force_two_pass=False):
    """x: (B, C, H, W) (NCHW, matching PyTorch).

    w1: (hidden, C), b1: (hidden,)   -- Linear(C, hidden)
    prelu_a: (1,)                    -- nn.PReLU() shared slope
    w2: (C, hidden), b2: (C,)        -- Linear(hidden, C)
    """
    B, C, H, W = x.shape
    HW = H * W
    hidden = w1.shape[0]
    itemsize = jnp.dtype(x.dtype).itemsize

    vmem_limit, block_budget = _vmem_plan()

    x_flat = x.reshape(B, C, HW)

    # One-time, wrapper-side weight prep (outside the kernels -> free).
    w1t = w1.T                                   # (C, hidden)
    w2t = w2.T                                   # (hidden, C)
    b1_row = b1.reshape(1, hidden)
    b2_row = b2.reshape(1, C)
    a_smem = prelu_a.reshape(1).astype(jnp.float32)
    inv_hw = 1.0 / float(HW)

    # ----------------------- fused path (x fits in VMEM) -------------------
    fused_bytes = B * C * HW * 4                 # f32-equivalent working set
    fused_ok = (7 * fused_bytes + (2 << 20)) <= vmem_limit
    if fused_ok and not force_two_pass:
        out_flat = pl.pallas_call(
            functools.partial(_fused_kernel, inv_hw=inv_hw),
            out_shape=jax.ShapeDtypeStruct((B, C, HW), x.dtype),
            grid_spec=pltpu.PrefetchScalarGridSpec(
                num_scalar_prefetch=0,
                grid=(1,),
                in_specs=[
                    pl.BlockSpec((B, C, HW), lambda i: (0, 0, 0)),       # x
                    pl.BlockSpec((C, hidden), lambda i: (0, 0)),         # w1^T
                    pl.BlockSpec((1, hidden), lambda i: (0, 0)),         # b1
                    pl.BlockSpec((hidden, C), lambda i: (0, 0)),         # w2^T
                    pl.BlockSpec((1, C), lambda i: (0, 0)),              # b2
                    pl.BlockSpec(memory_space=pltpu.MemorySpace.SMEM),   # slope
                ],
                out_specs=pl.BlockSpec((B, C, HW), lambda i: (0, 0, 0)),
            ),
            compiler_params=pltpu.CompilerParams(
                dimension_semantics=("arbitrary",),
                vmem_limit_bytes=vmem_limit),
        )(x_flat, w1t, b1_row, w2t, b2_row, a_smem)
        return out_flat.reshape(B, C, H, W)

    # ----------------------- pass 1: pooled mean + MLP ---------------------
    b_blk1, n_b1, hw_tile1, n_hw1 = _choose_tiles(B, C, HW, itemsize,
                                                  block_budget)
    chunk1 = 128 if hw_tile1 >= 128 else hw_tile1
    tail_valid1 = HW - (n_hw1 - 1) * hw_tile1

    s_b1c = pl.pallas_call(
        functools.partial(_pool_mlp_kernel, inv_hw=inv_hw, hw_tile=hw_tile1,
                          chunk=chunk1, tail_valid=tail_valid1),
        out_shape=jax.ShapeDtypeStruct((B, 1, C), jnp.float32),
        grid_spec=pltpu.PrefetchScalarGridSpec(
            num_scalar_prefetch=0,
            grid=(n_b1, n_hw1),
            in_specs=[
                pl.BlockSpec((b_blk1, C, hw_tile1), lambda b, t: (b, 0, t)),  # x
                pl.BlockSpec((C, hidden), lambda b, t: (0, 0)),               # w1^T
                pl.BlockSpec((1, hidden), lambda b, t: (0, 0)),               # b1
                pl.BlockSpec((hidden, C), lambda b, t: (0, 0)),               # w2^T
                pl.BlockSpec((1, C), lambda b, t: (0, 0)),                    # b2
                pl.BlockSpec(memory_space=pltpu.MemorySpace.SMEM),            # slope
            ],
            out_specs=pl.BlockSpec((b_blk1, 1, C), lambda b, t: (b, 0, 0)),
            scratch_shapes=[pltpu.VMEM((b_blk1, C, chunk1), jnp.float32)],
        ),
        compiler_params=pltpu.CompilerParams(
            dimension_semantics=("parallel", "arbitrary"),
            vmem_limit_bytes=vmem_limit),
    )(x_flat, w1t, b1_row, w2t, b2_row, a_smem)

    # (B, 1, C) -> (B, C, 1): same row-major linear order, free metadata
    # reshape; delivers a sublane/lane-broadcastable column to pass 2.
    s_col = s_b1c.reshape(B, C, 1)

    # ----------------------- pass 2: broadcast scale -----------------------
    b_blk2, n_b2, hw_tile2, n_hw2 = _choose_tiles(B, C, HW, itemsize,
                                                  block_budget)

    out_flat = pl.pallas_call(
        _scale_kernel,
        out_shape=jax.ShapeDtypeStruct((B, C, HW), x.dtype),
        grid_spec=pltpu.PrefetchScalarGridSpec(
            num_scalar_prefetch=0,
            grid=(n_b2, n_hw2),
            in_specs=[
                pl.BlockSpec((b_blk2, C, hw_tile2), lambda b, t: (b, 0, t)),  # x
                pl.BlockSpec((b_blk2, C, 1), lambda b, t: (b, 0, 0)),         # s
            ],
            out_specs=pl.BlockSpec((b_blk2, C, hw_tile2), lambda b, t: (b, 0, t)),
        ),
        compiler_params=pltpu.CompilerParams(
            dimension_semantics=("parallel", "parallel"),
            vmem_limit_bytes=vmem_limit),
    )(x_flat, s_col)

    return out_flat.reshape(B, C, H, W)


# --------------------------------------------------------------------------- #
# Reference + test
# --------------------------------------------------------------------------- #
def reference_se_block(x, w1, b1, prelu_a, w2, b2):
    """Pure-JAX reference mirroring the PyTorch module."""
    y = jnp.mean(x.astype(jnp.float32), axis=(2, 3))          # (B, C)
    h = y @ w1.T + b1                                         # (B, hidden)
    h = jnp.where(h >= 0, h, prelu_a[0] * h)                  # PReLU
    s = jax.nn.sigmoid(h @ w2.T + b2)                         # (B, C)
    return (x * s[:, :, None, None]).astype(x.dtype)


if __name__ == "__main__":
    def make_inputs(key, B, C, H, W, reduction):
        hidden = max(C // reduction, 1)
        kx, k1, k2, k3, k4 = jax.random.split(key, 5)
        x = jax.random.normal(kx, (B, C, H, W), dtype=jnp.float32)
        w1 = jax.random.normal(k1, (hidden, C), dtype=jnp.float32) * 0.1
        b1 = jax.random.normal(k2, (hidden,), dtype=jnp.float32) * 0.1
        a = jnp.array([0.25], dtype=jnp.float32)               # PReLU default
        w2 = jax.random.normal(k3, (C, hidden), dtype=jnp.float32) * 0.1
        b2 = jax.random.normal(k4, (C,), dtype=jnp.float32) * 0.1
        return x, w1, b1, a, w2, b2

    key = jax.random.PRNGKey(0)
    cases = [
        # (B, C, H,  W,  reduction, force_two_pass)
        (2, 64, 16, 16, 16, False),   # fused single-kernel path (module default)
        (4, 128, 16, 16, 16, True),   # streaming two-pass path, 128-aligned HW
        (2, 64, 12, 12, 16, True),    # streaming path, ragged HW (144 lanes)
    ]
    for idx, (B, C, H, W, r, force) in enumerate(cases):
        key, sub = jax.random.split(key)
        x, w1, b1, a, w2, b2 = make_inputs(sub, B, C, H, W, r)
        out = jax.block_until_ready(
            se_block(x, w1, b1, a, w2, b2, force_two_pass=force))
        ref = reference_se_block(x, w1, b1, a, w2, b2)
        assert out.shape == x.shape, f"shape mismatch in case {idx}"
        assert jnp.allclose(out, ref, atol=1e-4, rtol=1e-4), \
            f"mismatch vs reference in case {idx}"

    print("KERNEL_OK")
</pallas_src>

<mosaic_0001>
module attributes {stable_mosaic.version = 11 : i64} {
  func.func @_fused_kernel(%arg0: i32, %arg1: memref<2x64x256xf32, #tpu.memory_space<vmem>>, %arg2: memref<64x4xf32, #tpu.memory_space<vmem>>, %arg3: memref<1x4xf32, #tpu.memory_space<vmem>>, %arg4: memref<4x64xf32, #tpu.memory_space<vmem>>, %arg5: memref<1x64xf32, #tpu.memory_space<vmem>>, %arg6: memref<1xf32, #tpu.memory_space<smem>>, %arg7: memref<2x64x256xf32, #tpu.memory_space<vmem>>) attributes {dimension_semantics = [#tpu.dimension_semantics<arbitrary>], iteration_bounds = array<i64: 1>, scalar_prefetch = 0 : i64, scratch_operands = 0 : i64, tpu.core_type = #tpu.core_type<tc>, window_params = [{pipeline_mode = #tpu.pipeline_mode<synchronous>, transform_indices = @transform_0, window_bounds = array<i64: 2, 64, 256>}, {pipeline_mode = #tpu.pipeline_mode<synchronous>, transform_indices = @transform_1, window_bounds = array<i64: 64, 4>}, {pipeline_mode = #tpu.pipeline_mode<synchronous>, transform_indices = @transform_2, window_bounds = array<i64: 1, 4>}, {pipeline_mode = #tpu.pipeline_mode<synchronous>, transform_indices = @transform_3, window_bounds = array<i64: 4, 64>}, {pipeline_mode = #tpu.pipeline_mode<synchronous>, transform_indices = @transform_4, window_bounds = array<i64: 1, 64>}, {transform_indices = @transform_5, window_bounds = array<i64: 1>}, {pipeline_mode = #tpu.pipeline_mode<synchronous>, transform_indices = @transform_6, window_bounds = array<i64: 2, 64, 256>}]} {
    %c0 = arith.constant 0 : index
    %c0_0 = arith.constant 0 : index
    %c0_1 = arith.constant 0 : index
    %0 = vector.load %arg1[%c0, %c0_0, %c0_1] : memref<2x64x256xf32, #tpu.memory_space<vmem>>, vector<2x64x256xf32>
    %cst = arith.constant dense<0.000000e+00> : vector<2x64xf32>
    %1 = vector.multi_reduction <add>, %0, %cst [2] : vector<2x64x256xf32> to vector<2x64xf32>
    %cst_2 = arith.constant 3.906250e-03 : f32
    %2 = vector.broadcast %cst_2 : f32 to vector<2x64xf32>
    %3 = arith.mulf %1, %2 : vector<2x64xf32>
    %c0_3 = arith.constant 0 : index
    %c0_4 = arith.constant 0 : index
    %4 = vector.load %arg2[%c0_3, %c0_4] : memref<64x4xf32, #tpu.memory_space<vmem>>, vector<64x4xf32>
    %cst_5 = arith.constant dense<0.000000e+00> : vector<2x4xf32>
    %5 = tpu.matmul %3, %4, %cst_5 {dimension_numbers = #tpu.dot_dimension_numbers<[1], [0], [0], [1], [0, 0, 1, 1], [], []>} : vector<2x64xf32>, vector<64x4xf32>, vector<2x4xf32> -> vector<2x4xf32>
    %c0_6 = arith.constant 0 : index
    %c0_7 = arith.constant 0 : index
    %6 = vector.load %arg3[%c0_6, %c0_7] : memref<1x4xf32, #tpu.memory_space<vmem>>, vector<1x4xf32>
    %7 = vector.broadcast %6 : vector<1x4xf32> to vector<2x4xf32>
    %8 = arith.addf %5, %7 : vector<2x4xf32>
    %c0_8 = arith.constant 0 : index
    %9 = memref.load %arg6[%c0_8] : memref<1xf32, #tpu.memory_space<smem>>
    %cst_9 = arith.constant 0.000000e+00 : f32
    %10 = vector.broadcast %cst_9 : f32 to vector<2x4xf32>
    %11 = arith.cmpf oge, %8, %10 : vector<2x4xf32>
    %12 = vector.broadcast %9 : f32 to vector<2x4xf32>
    %13 = arith.mulf %12, %8 : vector<2x4xf32>
    %14 = arith.select %11, %8, %13 : vector<2x4xi1>, vector<2x4xf32>
    %c0_10 = arith.constant 0 : index
    %c0_11 = arith.constant 0 : index
    %15 = vector.load %arg4[%c0_10, %c0_11] : memref<4x64xf32, #tpu.memory_space<vmem>>, vector<4x64xf32>
    %cst_12 = arith.constant dense<0.000000e+00> : vector<2x64xf32>
    %16 = tpu.matmul %14, %15, %cst_12 {dimension_numbers = #tpu.dot_dimension_numbers<[1], [0], [0], [1], [0, 0, 1, 1], [], []>} : vector<2x4xf32>, vector<4x64xf32>, vector<2x64xf32> -> vector<2x64xf32>
    %c0_13 = arith.constant 0 : index
    %c0_14 = arith.constant 0 : index
    %17 = vector.load %arg5[%c0_13, %c0_14] : memref<1x64xf32, #tpu.memory_space<vmem>>, vector<1x64xf32>
    %18 = vector.broadcast %17 : vector<1x64xf32> to vector<2x64xf32>
    %19 = arith.addf %16, %18 : vector<2x64xf32>
    %20 = arith.negf %19 : vector<2x64xf32>
    %21 = math.exp %20 : vector<2x64xf32>
    %cst_15 = arith.constant 1.000000e+00 : f32
    %22 = vector.broadcast %cst_15 : f32 to vector<2x64xf32>
    %23 = arith.addf %22, %21 : vector<2x64xf32>
    %24 = arith.divf %22, %23 : vector<2x64xf32>
    %25 = vector.shape_cast %24 : vector<2x64xf32> to vector<2x64x1xf32>
    %26 = vector.broadcast %25 : vector<2x64x1xf32> to vector<2x64x256xf32>
    %27 = arith.mulf %0, %26 : vector<2x64x256xf32>
    %c0_16 = arith.constant 0 : index
    %c0_17 = arith.constant 0 : index
    %c0_18 = arith.constant 0 : index
    %28 = vector.load %arg7[%c0_16, %c0_17, %c0_18] : memref<2x64x256xf32, #tpu.memory_space<vmem>>, vector<2x64x256xf32>
    tpu.vector_store %arg7[%c0_16, %c0_17, %c0_18], %27 {strides = array<i32>} : memref<2x64x256xf32, #tpu.memory_space<vmem>>, vector<2x64x256xf32>,
    return
  }
  func.func @transform_0(%arg0: i32) -> (i32, i32, i32) {
    %c0_i32 = arith.constant 0 : i32
    %c0_i32_0 = arith.constant 0 : i32
    %c0_i32_1 = arith.constant 0 : i32
    %c0_i32_2 = arith.constant 0 : i32
    return %c0_i32, %c0_i32_0, %c0_i32_1 : i32, i32, i32
  }
  func.func @transform_1(%arg0: i32) -> (i32, i32) {
    %c0_i32 = arith.constant 0 : i32
    %c0_i32_0 = arith.constant 0 : i32
    %c0_i32_1 = arith.constant 0 : i32
    return %c0_i32, %c0_i32_0 : i32, i32
  }
  func.func @transform_2(%arg0: i32) -> (i32, i32) {
    %c0_i32 = arith.constant 0 : i32
    %c0_i32_0 = arith.constant 0 : i32
    %c0_i32_1 = arith.constant 0 : i32
    return %c0_i32, %c0_i32_0 : i32, i32
  }
  func.func @transform_3(%arg0: i32) -> (i32, i32) {
    %c0_i32 = arith.constant 0 : i32
    %c0_i32_0 = arith.constant 0 : i32
    %c0_i32_1 = arith.constant 0 : i32
    return %c0_i32, %c0_i32_0 : i32, i32
  }
  func.func @transform_4(%arg0: i32) -> (i32, i32) {
    %c0_i32 = arith.constant 0 : i32
    %c0_i32_0 = arith.constant 0 : i32
    %c0_i32_1 = arith.constant 0 : i32
    return %c0_i32, %c0_i32_0 : i32, i32
  }
  func.func @transform_5(%arg0: i32) -> i32 {
    %c0_i32 = arith.constant 0 : i32
    %c0_i32_0 = arith.constant 0 : i32
    return %c0_i32 : i32
  }
  func.func @transform_6(%arg0: i32) -> (i32, i32, i32) {
    %c0_i32 = arith.constant 0 : i32
    %c0_i32_0 = arith.constant 0 : i32
    %c0_i32_1 = arith.constant 0 : i32
    %c0_i32_2 = arith.constant 0 : i32
    return %c0_i32, %c0_i32_0, %c0_i32_1 : i32, i32, i32
  }
}

</mosaic_0001>

<llo_original>
// kernel: tpu_custom_call.1
$region0: #{tpu_custom_call.1}
  #allocation0 [shape = 'u32[]', space=smem, size = 0x4, offset = 0x4, fixed_abs, tag = 'smem constant byte address 0x4 - core index']
  #allocation1 [shape = 'u32[144,128]{1,0:T(1,128)}', space=vmem, size = 0x12000, scoped, tag = 'internal scratch']
  #allocation2 [shape = 'f32[1]{0:T(128)S(6)}', space=smem, size = 0x200, scoped, tag = 'scoped memory for tpu_custom_call.1']
  %s0 = inlined_call_operand.hbm [shape: f32[2,64,256], index: 0, kind: input, shape index: {}]
  %s1 = inlined_call_operand.vmem [shape: f32[64,4], index: 1, kind: input, shape index: {}]
  %s2 = inlined_call_operand.vmem [shape: f32[1,4], index: 2, kind: input, shape index: {}]
  %s3 = inlined_call_operand.vmem [shape: f32[4,64], index: 3, kind: input, shape index: {}]
  %s4 = inlined_call_operand.vmem [shape: f32[1,64], index: 4, kind: input, shape index: {}]
  %s5 = inlined_call_operand.<no memory space> [shape: f32[1], index: 5, kind: input, shape index: {}]
  %s6 = inlined_call_operand.hbm [shape: f32[2,64,256], index: 6, kind: output, shape index: {}]
  %s7 = sld [smem:[#allocation0]]
  $region38: #{tpu_custom_call.1} parent=0
    _
  %s9 = ssub.s32 1, %s7
  %s10 = scalar_select 0, %s9, %s7
  %11 = sst [smem:[#allocation2]] %s5
  $region1: #{tpu_custom_call.1} parent=0
    #allocation3 [shape = 'u8[131072]{0}', space=vmem, size = 0x20000, scoped, tag = 'input window, operand 0, single buffered']
    #allocation4 [shape = 's32[1]{0}', space=sflag, size = 0x4, scoped, tag = 'scoped memory for tpu_custom_call.1']
    #allocation5 [shape = 's32[1]{0}', space=sflag, size = 0x4, scoped, tag = 'scoped memory for tpu_custom_call.1']
    #allocation6 [shape = 'u8[131072]{0}', space=vmem, size = 0x20000, scoped, tag = 'output window, operand 0, single buffered']
    %12 = vsyncpa [#allocation4], 0
    %13 = vsyncpa [#allocation5], 0
    // Predicated region
    $region2: #{tpu_custom_call.1} parent=1 // pred_check
      _
    $region3: #{tpu_custom_call.1} parent=1 // pred_check_branch
      %15 = sbr.rel (0) target = $region5
    $region4: #{tpu_custom_call.1} parent=1 // pred_region
      %s17 = ssub.s32 4096, 4096
      %18 = vsyncadd [#allocation4], %s17
      %s19 = sshll.u32 [#allocation3], 4
      %s20 = int_to_ptr.vmem [resolvable:$true] %s19
      %25 = dma.hbm_to_vmem [thread:$0]  %s0, 4096, %s20, [#allocation4], 256, 256, 16
    $region5: #{tpu_custom_call.1} parent=1 // pred_fallthru
      _
    // Predicated region
    $region6: #{tpu_custom_call.1} parent=1 // pred_check
      _
    $region7: #{tpu_custom_call.1} parent=1 // pred_check_branch
      %27 = sbr.rel (0) target = $region9
    $region8: #{tpu_custom_call.1} parent=1 // pred_region
      _
    $region9: #{tpu_custom_call.1} parent=1 // pred_fallthru
      _
    // Predicated region
    $region10: #{tpu_custom_call.1} parent=1 // pred_check
      _
    $region11: #{tpu_custom_call.1} parent=1 // pred_check_branch
      %29 = sbr.rel (0) target = $region13
    $region12: #{tpu_custom_call.1} parent=1 // pred_region
      _
    $region13: #{tpu_custom_call.1} parent=1 // pred_fallthru
      _
    // Predicated region
    $region14: #{tpu_custom_call.1} parent=1 // pred_check
      _
    $region15: #{tpu_custom_call.1} parent=1 // pred_check_branch
      %31 = sbr.rel (0) target = $region17
    $region16: #{tpu_custom_call.1} parent=1 // pred_region
      _
    $region17: #{tpu_custom_call.1} parent=1 // pred_fallthru
      _
    // Predicated region
    $region18: #{tpu_custom_call.1} parent=1 // pred_check
      _
    $region19: #{tpu_custom_call.1} parent=1 // pred_check_branch
      %33 = sbr.rel (0) target = $region21
    $region20: #{tpu_custom_call.1} parent=1 // pred_region
      _
    $region21: #{tpu_custom_call.1} parent=1 // pred_fallthru
      _
    // Predicated region
    $region22: #{tpu_custom_call.1} parent=1 // pred_check
      _
    $region23: #{tpu_custom_call.1} parent=1 // pred_check_branch
      %35 = sbr.rel (0) target = $region25
    $region24: #{tpu_custom_call.1} parent=1 // pred_region
      _
    $region25: #{tpu_custom_call.1} parent=1 // pred_fallthru
      _
    // Predicated region
    $region26: #{tpu_custom_call.1} parent=1 // pred_check
      _
    $region27: #{tpu_custom_call.1} parent=1 // pred_check_branch
      %37 = sbr.rel (0) target = $region29
    $region28: #{tpu_custom_call.1} parent=1 // pred_region
      %38 = dma.done [#allocation4], 4096
    $region29: #{tpu_custom_call.1} parent=1 // pred_fallthru
      _
    %v39 = vld [vmem:[#allocation3] sm:$0xff]
    %v40 = vld [vmem:[#allocation3 + $0x8] sm:$0xff]
    %v41 = vld [vmem:[#allocation3 + $0x10] sm:$0xff]
    %v42 = vld [vmem:[#allocation3 + $0x18] sm:$0xff]
    %v43 = vld [vmem:[#allocation3 + $0x20] sm:$0xff]
    %v44 = vld [vmem:[#allocation3 + $0x28] sm:$0xff]
    %v45 = vld [vmem:[#allocation3 + $0x30] sm:$0xff]
    %v46 = vld [vmem:[#allocation3 + $0x38] sm:$0xff]
    %v47 = vld [vmem:[#allocation3 + $0x40] sm:$0xff]
    %v48 = vld [vmem:[#allocation3 + $0x48] sm:$0xff]
    %v49 = vld [vmem:[#allocation3 + $0x50] sm:$0xff]
    %v50 = vld [vmem:[#allocation3 + $0x58] sm:$0xff]
    %v51 = vld [vmem:[#allocation3 + $0x60] sm:$0xff]
    %v52 = vld [vmem:[#allocation3 + $0x68] sm:$0xff]
    %v53 = vld [vmem:[#allocation3 + $0x70] sm:$0xff]
    %v54 = vld [vmem:[#allocation3 + $0x78] sm:$0xff]
    %v55 = vld [vmem:[#allocation3 + $0x80] sm:$0xff]
    %v56 = vld [vmem:[#allocation3 + $0x88] sm:$0xff]
    %v57 = vld [vmem:[#allocation3 + $0x90] sm:$0xff]
    %v58 = vld [vmem:[#allocation3 + $0x98] sm:$0xff]
    %v59 = vld [vmem:[#allocation3 + $0xa0] sm:$0xff]
    %v60 = vld [vmem:[#allocation3 + $0xa8] sm:$0xff]
    %v61 = vld [vmem:[#allocation3 + $0xb0] sm:$0xff]
    %v62 = vld [vmem:[#allocation3 + $0xb8] sm:$0xff]
    %v63 = vld [vmem:[#allocation3 + $0xc0] sm:$0xff]
    %v64 = vld [vmem:[#allocation3 + $0xc8] sm:$0xff]
    %v65 = vld [vmem:[#allocation3 + $0xd0] sm:$0xff]
    %v66 = vld [vmem:[#allocation3 + $0xd8] sm:$0xff]
    %v67 = vld [vmem:[#allocation3 + $0xe0] sm:$0xff]
    %v68 = vld [vmem:[#allocation3 + $0xe8] sm:$0xff]
    %v69 = vld [vmem:[#allocation3 + $0xf0] sm:$0xff]
    %v70 = vld [vmem:[#allocation3 + $0xf8] sm:$0xff]
    %v71 = vadd.f32 %v39, %v40
    %72 = vadd.xlane.f32.xlu0 %v71
    %v73 = vpop.xlane.xlu0 %72
    %v74 = vadd.f32 %v41, %v42
    %75 = vadd.xlane.f32.xlu0 %v74
    %v76 = vpop.xlane.xlu0 %75
    %v77 = vadd.f32 %v43, %v44
    %78 = vadd.xlane.f32.xlu0 %v77
    %v79 = vpop.xlane.xlu0 %78
    %v80 = vadd.f32 %v45, %v46
    %81 = vadd.xlane.f32.xlu0 %v80
    %v82 = vpop.xlane.xlu0 %81
    %v83 = vadd.f32 %v47, %v48
    %84 = vadd.xlane.f32.xlu0 %v83
    %v85 = vpop.xlane.xlu0 %84
    %v86 = vadd.f32 %v49, %v50
    %87 = vadd.xlane.f32.xlu0 %v86
    %v88 = vpop.xlane.xlu0 %87
    %v89 = vadd.f32 %v51, %v52
    %90 = vadd.xlane.f32.xlu0 %v89
    %v91 = vpop.xlane.xlu0 %90
    %v92 = vadd.f32 %v53, %v54
    %93 = vadd.xlane.f32.xlu0 %v92
    %v94 = vpop.xlane.xlu0 %93
    %v95 = vadd.f32 %v55, %v56
    %96 = vadd.xlane.f32.xlu0 %v95
    %v97 = vpop.xlane.xlu0 %96
    %v98 = vadd.f32 %v57, %v58
    %99 = vadd.xlane.f32.xlu0 %v98
    %v100 = vpop.xlane.xlu0 %99
    %v101 = vadd.f32 %v59, %v60
    %102 = vadd.xlane.f32.xlu0 %v101
    %v103 = vpop.xlane.xlu0 %102
    %v104 = vadd.f32 %v61, %v62
    %105 = vadd.xlane.f32.xlu0 %v104
    %v106 = vpop.xlane.xlu0 %105
    %v107 = vadd.f32 %v63, %v64
    %108 = vadd.xlane.f32.xlu0 %v107
    %v109 = vpop.xlane.xlu0 %108
    %v110 = vadd.f32 %v65, %v66
    %111 = vadd.xlane.f32.xlu0 %v110
    %v112 = vpop.xlane.xlu0 %111
    %v113 = vadd.f32 %v67, %v68
    %114 = vadd.xlane.f32.xlu0 %v113
    %v115 = vpop.xlane.xlu0 %114
    %v116 = vadd.f32 %v69, %v70
    %117 = vadd.xlane.f32.xlu0 %v116
    %v118 = vpop.xlane.xlu0 %117
    %v119 = vmul.f32 %v73, 0.00390625
    %v120 = vmul.f32 %v76, 0.00390625
    %v121 = vmul.f32 %v79, 0.00390625
    %v122 = vmul.f32 %v82, 0.00390625
    %v123 = vmul.f32 %v85, 0.00390625
    %v124 = vmul.f32 %v88, 0.00390625
    %v125 = vmul.f32 %v91, 0.00390625
    %v126 = vmul.f32 %v94, 0.00390625
    %v127 = vmul.f32 %v97, 0.00390625
    %v128 = vmul.f32 %v100, 0.00390625
    %v129 = vmul.f32 %v103, 0.00390625
    %v130 = vmul.f32 %v106, 0.00390625
    %v131 = vmul.f32 %v109, 0.00390625
    %v132 = vmul.f32 %v112, 0.00390625
    %v133 = vmul.f32 %v115, 0.00390625
    %v134 = vmul.f32 %v118, 0.00390625
    %v135 = vld [vmem:[%s1] sm:$0xff]
    %v136 = vld [vmem:[%s1 + $0x8] sm:$0xff]
    %v137 = vld [vmem:[%s1 + $0x10] sm:$0xff]
    %v138 = vld [vmem:[%s1 + $0x18] sm:$0xff]
    %v139 = vld [vmem:[%s1 + $0x20] sm:$0xff]
    %v140 = vld [vmem:[%s1 + $0x28] sm:$0xff]
    %v141 = vld [vmem:[%s1 + $0x30] sm:$0xff]
    %v142 = vld [vmem:[%s1 + $0x38] sm:$0xff]
    %v143 = vld [vmem:[%s2] sm:$0x1]
    %v145 = vlaneseq
    %v146 = vshrl.u32 %v145, 7
    %v147 = vsub.s32 0, %v146
    %v148 = vrot.slane %v143, %v147
    %v166 = vlaneseq
    %v167 = vand.u32 %v166, 127
    %v168 = vlaneseq
    %v169 = vshrl.u32 %v168, 7
    %v170 = vsub.s32 %v167, %v169
    %v171 = vrot.slane %v119, %v170
    %v172 = vadd.s32 %v167, 4294967288
    %v173 = vlaneseq
    %v174 = vshrl.u32 %v173, 7
    %v175 = vsub.s32 %v172, %v174
    %v176 = vrot.slane %v120, %v175
    %vm177 = vcmask 130112
    %v178 = vsel %vm177, %v176, %v171
    %v179 = vadd.s32 %v167, 4294967280
    %v180 = vlaneseq
    %v181 = vshrl.u32 %v180, 7
    %v182 = vsub.s32 %v179, %v181
    %v183 = vrot.slane %v121, %v182
    %vm184 = vcmask 195712
    %v185 = vsel %vm184, %v183, %v178
    %v186 = vadd.s32 %v167, 4294967272
    %v187 = vlaneseq
    %v188 = vshrl.u32 %v187, 7
    %v189 = vsub.s32 %v186, %v188
    %v190 = vrot.slane %v122, %v189
    %vm191 = vcmask 261312
    %v192 = vsel %vm191, %v190, %v185
    %v193 = vadd.s32 %v167, 4294967264
    %v194 = vlaneseq
    %v195 = vshrl.u32 %v194, 7
    %v196 = vsub.s32 %v193, %v195
    %v197 = vrot.slane %v123, %v196
    %vm198 = vcmask 326912
    %v199 = vsel %vm198, %v197, %v192
    %v200 = vadd.s32 %v167, 4294967256
    %v201 = vlaneseq
    %v202 = vshrl.u32 %v201, 7
    %v203 = vsub.s32 %v200, %v202
    %v204 = vrot.slane %v124, %v203
    %vm205 = vcmask 392512
    %v206 = vsel %vm205, %v204, %v199
    %v207 = vadd.s32 %v167, 4294967248
    %v208 = vlaneseq
    %v209 = vshrl.u32 %v208, 7
    %v210 = vsub.s32 %v207, %v209
    %v211 = vrot.slane %v125, %v210
    %vm212 = vcmask 458112
    %v213 = vsel %vm212, %v211, %v206
    %v214 = vadd.s32 %v167, 4294967240
    %v215 = vlaneseq
    %v216 = vshrl.u32 %v215, 7
    %v217 = vsub.s32 %v214, %v216
    %v218 = vrot.slane %v126, %v217
    %vm219 = vcmask 523712
    %v220 = vsel %vm219, %v218, %v213
    %v221 = vlaneseq
    %v222 = vshrl.u32 %v221, 7
    %v223 = vsub.s32 %v167, %v222
    %v224 = vrot.slane %v127, %v223
    %v225 = vlaneseq
    %v226 = vshrl.u32 %v225, 7
    %v227 = vsub.s32 %v172, %v226
    %v228 = vrot.slane %v128, %v227
    %v229 = vsel %vm177, %v228, %v224
    %v230 = vlaneseq
    %v231 = vshrl.u32 %v230, 7
    %v232 = vsub.s32 %v179, %v231
    %v233 = vrot.slane %v129, %v232
    %v234 = vsel %vm184, %v233, %v229
    %v235 = vlaneseq
    %v236 = vshrl.u32 %v235, 7
    %v237 = vsub.s32 %v186, %v236
    %v238 = vrot.slane %v130, %v237
    %v239 = vsel %vm191, %v238, %v234
    %v240 = vlaneseq
    %v241 = vshrl.u32 %v240, 7
    %v242 = vsub.s32 %v193, %v241
    %v243 = vrot.slane %v131, %v242
    %v244 = vsel %vm198, %v243, %v239
    %v245 = vlaneseq
    %v246 = vshrl.u32 %v245, 7
    %v247 = vsub.s32 %v200, %v246
    %v248 = vrot.slane %v132, %v247
    %v249 = vsel %vm205, %v248, %v244
    %v250 = vlaneseq
    %v251 = vshrl.u32 %v250, 7
    %v252 = vsub.s32 %v207, %v251
    %v253 = vrot.slane %v133, %v252
    %v254 = vsel %vm212, %v253, %v249
    %v255 = vlaneseq
    %v256 = vshrl.u32 %v255, 7
    %v257 = vsub.s32 %v214, %v256
    %v258 = vrot.slane %v134, %v257
    %v259 = vsel %vm219, %v258, %v254
    %vm260 = vcmask 1041409
    %v261 = vsel %vm260, %v259, %v220
    %vm262 = vcmask 523264
    %v263 = vsel %vm262, %v261, 0
    %265 = vmatprep.subr.mxu0 0.0
    %266 = vmatpush1.msra.mxu0 %v135
    %267 = vmatprep.subr.mxu0 0.0
    %268 = vmatpush1.msra.mxu0 %v136
    %269 = vmatprep.subr.mxu0 0.0
    %270 = vmatpush1.msra.mxu0 %v137
    %271 = vmatprep.subr.mxu0 0.0
    %272 = vmatpush1.msra.mxu0 %v138
    %273 = vmatprep.subr.mxu0 0.0
    %274 = vmatpush1.msra.mxu0 %v139
    %275 = vmatprep.subr.mxu0 0.0
    %276 = vmatpush1.msra.mxu0 %v140
    %277 = vmatprep.subr.mxu0 0.0
    %278 = vmatpush1.msra.mxu0 %v141
    %279 = vmatprep.subr.mxu0 0.0
    %280 = vmatpush1.msra.mxu0 %v142
    %281 = vmatprep.subr.mxu0 0.0
    %282 = vmatpush1.msra.mxu0 0.0
    %283 = vmatprep.subr.mxu0 0.0
    %284 = vmatpush1.msra.mxu0 0.0
    %285 = vmatprep.subr.mxu0 0.0
    %286 = vmatpush1.msra.mxu0 0.0
    %287 = vmatprep.subr.mxu0 0.0
    %288 = vmatpush1.msra.mxu0 0.0
    %289 = vmatprep.subr.mxu0 0.0
    %290 = vmatpush1.msra.mxu0 0.0
    %291 = vmatprep.subr.mxu0 0.0
    %292 = vmatpush1.msra.mxu0 0.0
    %293 = vmatprep.subr.mxu0 0.0
    %294 = vmatpush1.msra.mxu0 0.0
    %295 = vmatprep.subr.mxu0 0.0
    %296 = vmatpush1.msra.mxu0 0.0
    %297 = vmatprep.subr.mxu0 0.0
    %298 = vmatpush1.msra.mxu0 0.0
    %299 = vmatprep.subr.mxu0 0.0
    %300 = vmatpush1.msra.mxu0 0.0
    %301 = vmatprep.subr.mxu0 0.0
    %302 = vmatpush1.msra.mxu0 0.0
    %303 = vmatprep.subr.mxu0 0.0
    %304 = vmatpush1.msra.mxu0 0.0
    %305 = vmatprep.subr.mxu0 0.0
    %306 = vmatpush1.msra.mxu0 0.0
    %307 = vmatprep.subr.mxu0 0.0
    %308 = vmatpush1.msra.mxu0 0.0
    %309 = vmatprep.subr.mxu0 0.0
    %310 = vmatpush1.msra.mxu0 0.0
    %311 = vmatprep.subr.mxu0 0.0
    %312 = vmatpush1.msra.mxu0 0.0
    %313 = vmatprep.subr.mxu0 0.0
    %314 = vmatpush1.msra.mxu0 0.0
    %315 = vmatprep.subr.mxu0 0.0
    %316 = vmatpush1.msra.mxu0 0.0
    %317 = vmatprep.subr.mxu0 0.0
    %318 = vmatpush1.msra.mxu0 0.0
    %319 = vmatprep.subr.mxu0 0.0
    %320 = vmatpush1.msra.mxu0 0.0
    %321 = vmatprep.subr.mxu0 0.0
    %322 = vmatpush1.msra.mxu0 0.0
    %323 = vmatprep.subr.mxu0 0.0
    %324 = vmatpush1.msra.mxu0 0.0
    %325 = vmatprep.subr.mxu0 0.0
    %326 = vmatpush1.msra.mxu0 0.0
    %327 = vmatprep.subr.mxu0 0.0
    %328 = vmatpush1.msra.mxu0 0.0
    %329 = vmatprep.mubr.f32.mxu0 0.0
    %330 = vmatmul.mubr.f32.gmra.mrb[0].mxu0 %v263
    %v331 = vpop.f32.mrb[0].mxu0
    %v332 = vadd.f32 %v148, %v331
    %v333 = vpop.f32.mrb[0].mxu0
    %334 = vdwg.mxu0
    %s335 = sld [smem:[#allocation2]]
    %vm336 = vcmp.ge.f32.partialorder %v332, 0.0
    %v337 = vstv %s335
    %v338 = vmul.f32 %v337, %v332
    %v339 = vsel %vm336, %v332, %v338
    %v340 = vld [vmem:[%s3] sm:$0xf]
    %v341 = vld [vmem:[%s4] sm:$0x1]
    %v343 = vlaneseq
    %v344 = vshrl.u32 %v343, 7
    %v345 = vsub.s32 0, %v344
    %v346 = vrot.slane %v341, %v345
    %vm348 = vcmask 31744
    %v350 = vsel %vm348, %v339, 0
    %vm352 = vcmask 1043456
    %v354 = vsel %vm352, %v340, 0
    %356 = vmatprep.subr.mxu0 0.0
    %357 = vmatpush1.msra.mxu0 %v354
    %358 = vmatprep.subr.mxu0 0.0
    %359 = vmatpush1.msra.mxu0 0.0
    %360 = vmatprep.subr.mxu0 0.0
    %361 = vmatpush1.msra.mxu0 0.0
    %362 = vmatprep.subr.mxu0 0.0
    %363 = vmatpush1.msra.mxu0 0.0
    %364 = vmatprep.subr.mxu0 0.0
    %365 = vmatpush1.msra.mxu0 0.0
    %366 = vmatprep.subr.mxu0 0.0
    %367 = vmatpush1.msra.mxu0 0.0
    %368 = vmatprep.subr.mxu0 0.0
    %369 = vmatpush1.msra.mxu0 0.0
    %370 = vmatprep.subr.mxu0 0.0
    %371 = vmatpush1.msra.mxu0 0.0
    %372 = vmatprep.subr.mxu0 0.0
    %373 = vmatpush1.msra.mxu0 0.0
    %374 = vmatprep.subr.mxu0 0.0
    %375 = vmatpush1.msra.mxu0 0.0
    %376 = vmatprep.subr.mxu0 0.0
    %377 = vmatpush1.msra.mxu0 0.0
    %378 = vmatprep.subr.mxu0 0.0
    %379 = vmatpush1.msra.mxu0 0.0
    %380 = vmatprep.subr.mxu0 0.0
    %381 = vmatpush1.msra.mxu0 0.0
    %382 = vmatprep.subr.mxu0 0.0
    %383 = vmatpush1.msra.mxu0 0.0
    %384 = vmatprep.subr.mxu0 0.0
    %385 = vmatpush1.msra.mxu0 0.0
    %386 = vmatprep.subr.mxu0 0.0
    %387 = vmatpush1.msra.mxu0 0.0
    %388 = vmatprep.subr.mxu0 0.0
    %389 = vmatpush1.msra.mxu0 0.0
    %390 = vmatprep.subr.mxu0 0.0
    %391 = vmatpush1.msra.mxu0 0.0
    %392 = vmatprep.subr.mxu0 0.0
    %393 = vmatpush1.msra.mxu0 0.0
    %394 = vmatprep.subr.mxu0 0.0
    %395 = vmatpush1.msra.mxu0 0.0
    %396 = vmatprep.subr.mxu0 0.0
    %397 = vmatpush1.msra.mxu0 0.0
    %398 = vmatprep.subr.mxu0 0.0
    %399 = vmatpush1.msra.mxu0 0.0
    %400 = vmatprep.subr.mxu0 0.0
    %401 = vmatpush1.msra.mxu0 0.0
    %402 = vmatprep.subr.mxu0 0.0
    %403 = vmatpush1.msra.mxu0 0.0
    %404 = vmatprep.subr.mxu0 0.0
    %405 = vmatpush1.msra.mxu0 0.0
    %406 = vmatprep.subr.mxu0 0.0
    %407 = vmatpush1.msra.mxu0 0.0
    %408 = vmatprep.subr.mxu0 0.0
    %409 = vmatpush1.msra.mxu0 0.0
    %410 = vmatprep.subr.mxu0 0.0
    %411 = vmatpush1.msra.mxu0 0.0
    %412 = vmatprep.subr.mxu0 0.0
    %413 = vmatpush1.msra.mxu0 0.0
    %414 = vmatprep.subr.mxu0 0.0
    %415 = vmatpush1.msra.mxu0 0.0
    %416 = vmatprep.subr.mxu0 0.0
    %417 = vmatpush1.msra.mxu0 0.0
    %418 = vmatprep.subr.mxu0 0.0
    %419 = vmatpush1.msra.mxu0 0.0
    %420 = vmatprep.mubr.f32.mxu0 0.0
    %421 = vmatmul.mubr.f32.gmra.mrb[0].mxu0 %v350
    %v422 = vpop.f32.mrb[0].mxu0
    %v423 = vadd.f32 %v346, %v422
    %v424 = vpop.f32.mrb[0].mxu0
    %425 = vdwg.mxu0
    %v426 = vxor.u32 %v423, 2147483648
    %v427 = vmul.f32 %v426, 1.442695
    %v428 = vpow.pop %v427
    %v429 = vadd.f32 %v428, 1.0
    %v430 = vrcp.pop %v429
    %v431 = vmul.f32 1.0, %v430
    %v432 = vlaneseq
    %v433 = vshrl.u32 %v432, 7
    %v434 = vsub.s32 0, %v433
    %v435 = vrot.slane %v431, %v434
    %437 = vbcast.lane.b32.xlu0 %v435, 256
    %v438 = vpop.permute.xlu0 %437
    %s440 = sor.u32 256, 8
    %441 = vbcast.lane.b32.xlu0 %v435, %s440
    %v442 = vpop.permute.xlu0 %441
    %s444 = sor.u32 256, 16
    %445 = vbcast.lane.b32.xlu0 %v435, %s444
    %v446 = vpop.permute.xlu0 %445
    %s448 = sor.u32 256, 24
    %449 = vbcast.lane.b32.xlu0 %v435, %s448
    %v450 = vpop.permute.xlu0 %449
    %s452 = sor.u32 256, 32
    %453 = vbcast.lane.b32.xlu0 %v435, %s452
    %v454 = vpop.permute.xlu0 %453
    %s456 = sor.u32 256, 40
    %457 = vbcast.lane.b32.xlu0 %v435, %s456
    %v458 = vpop.permute.xlu0 %457
    %s460 = sor.u32 256, 48
    %461 = vbcast.lane.b32.xlu0 %v435, %s460
    %v462 = vpop.permute.xlu0 %461
    %s464 = sor.u32 256, 56
    %465 = vbcast.lane.b32.xlu0 %v435, %s464
    %v466 = vpop.permute.xlu0 %465
    %v467 = vlaneseq
    %v468 = vshrl.u32 %v467, 7
    %v469 = vsub.s32 1, %v468
    %v470 = vrot.slane %v431, %v469
    %472 = vbcast.lane.b32.xlu0 %v470, 256
    %v473 = vpop.permute.xlu0 %472
    %s475 = sor.u32 256, 8
    %476 = vbcast.lane.b32.xlu0 %v470, %s475
    %v477 = vpop.permute.xlu0 %476
    %s479 = sor.u32 256, 16
    %480 = vbcast.lane.b32.xlu0 %v470, %s479
    %v481 = vpop.permute.xlu0 %480
    %s483 = sor.u32 256, 24
    %484 = vbcast.lane.b32.xlu0 %v470, %s483
    %v485 = vpop.permute.xlu0 %484
    %s487 = sor.u32 256, 32
    %488 = vbcast.lane.b32.xlu0 %v470, %s487
    %v489 = vpop.permute.xlu0 %488
    %s491 = sor.u32 256, 40
    %492 = vbcast.lane.b32.xlu0 %v470, %s491
    %v493 = vpop.permute.xlu0 %492
    %s495 = sor.u32 256, 48
    %496 = vbcast.lane.b32.xlu0 %v470, %s495
    %v497 = vpop.permute.xlu0 %496
    %s499 = sor.u32 256, 56
    %500 = vbcast.lane.b32.xlu0 %v470, %s499
    %v501 = vpop.permute.xlu0 %500
    %v502 = vmul.f32 %v39, %v438
    %v503 = vmul.f32 %v40, %v438
    %v504 = vmul.f32 %v41, %v442
    %v505 = vmul.f32 %v42, %v442
    %v506 = vmul.f32 %v43, %v446
    %v507 = vmul.f32 %v44, %v446
    %v508 = vmul.f32 %v45, %v450
    %v509 = vmul.f32 %v46, %v450
    %v510 = vmul.f32 %v47, %v454
    %v511 = vmul.f32 %v48, %v454
    %v512 = vmul.f32 %v49, %v458
    %v513 = vmul.f32 %v50, %v458
    %v514 = vmul.f32 %v51, %v462
    %v515 = vmul.f32 %v52, %v462
    %v516 = vmul.f32 %v53, %v466
    %v517 = vmul.f32 %v54, %v466
    %v518 = vmul.f32 %v55, %v473
    %v519 = vmul.f32 %v56, %v473
    %v520 = vmul.f32 %v57, %v477
    %v521 = vmul.f32 %v58, %v477
    %v522 = vmul.f32 %v59, %v481
    %v523 = vmul.f32 %v60, %v481
    %v524 = vmul.f32 %v61, %v485
    %v525 = vmul.f32 %v62, %v485
    %v526 = vmul.f32 %v63, %v489
    %v527 = vmul.f32 %v64, %v489
    %v528 = vmul.f32 %v65, %v493
    %v529 = vmul.f32 %v66, %v493
    %v530 = vmul.f32 %v67, %v497
    %v531 = vmul.f32 %v68, %v497
    %v532 = vmul.f32 %v69, %v501
    %v533 = vmul.f32 %v70, %v501
    %534 = vst [vmem:[#allocation6] sm:$0xff] %v502
    %535 = vst [vmem:[#allocation6 + $0x8] sm:$0xff] %v503
    %536 = vst [vmem:[#allocation6 + $0x10] sm:$0xff] %v504
    %537 = vst [vmem:[#allocation6 + $0x18] sm:$0xff] %v505
    %538 = vst [vmem:[#allocation6 + $0x20] sm:$0xff] %v506
    %539 = vst [vmem:[#allocation6 + $0x28] sm:$0xff] %v507
    %540 = vst [vmem:[#allocation6 + $0x30] sm:$0xff] %v508
    %541 = vst [vmem:[#allocation6 + $0x38] sm:$0xff] %v509
    %542 = vst [vmem:[#allocation6 + $0x40] sm:$0xff] %v510
    %543 = vst [vmem:[#allocation6 + $0x48] sm:$0xff] %v511
    %544 = vst [vmem:[#allocation6 + $0x50] sm:$0xff] %v512
    %545 = vst [vmem:[#allocation6 + $0x58] sm:$0xff] %v513
    %546 = vst [vmem:[#allocation6 + $0x60] sm:$0xff] %v514
    %547 = vst [vmem:[#allocation6 + $0x68] sm:$0xff] %v515
    %548 = vst [vmem:[#allocation6 + $0x70] sm:$0xff] %v516
    %549 = vst [vmem:[#allocation6 + $0x78] sm:$0xff] %v517
    %550 = vst [vmem:[#allocation6 + $0x80] sm:$0xff] %v518
    %551 = vst [vmem:[#allocation6 + $0x88] sm:$0xff] %v519
    %552 = vst [vmem:[#allocation6 + $0x90] sm:$0xff] %v520
    %553 = vst [vmem:[#allocation6 + $0x98] sm:$0xff] %v521
    %554 = vst [vmem:[#allocation6 + $0xa0] sm:$0xff] %v522
    %555 = vst [vmem:[#allocation6 + $0xa8] sm:$0xff] %v523
    %556 = vst [vmem:[#allocation6 + $0xb0] sm:$0xff] %v524
    %557 = vst [vmem:[#allocation6 + $0xb8] sm:$0xff] %v525
    %558 = vst [vmem:[#allocation6 + $0xc0] sm:$0xff] %v526
    %559 = vst [vmem:[#allocation6 + $0xc8] sm:$0xff] %v527
    %560 = vst [vmem:[#allocation6 + $0xd0] sm:$0xff] %v528
    %561 = vst [vmem:[#allocation6 + $0xd8] sm:$0xff] %v529
    %562 = vst [vmem:[#allocation6 + $0xe0] sm:$0xff] %v530
    %563 = vst [vmem:[#allocation6 + $0xe8] sm:$0xff] %v531
    %564 = vst [vmem:[#allocation6 + $0xf0] sm:$0xff] %v532
    %565 = vst [vmem:[#allocation6 + $0xf8] sm:$0xff] %v533
    // Predicated region
    $region30: #{tpu_custom_call.1} parent=1 // pred_check
      _
    $region31: #{tpu_custom_call.1} parent=1 // pred_check_branch
      %567 = sbr.rel (0) target = $region33
    $region32: #{tpu_custom_call.1} parent=1 // pred_region
      %s569 = ssub.s32 4096, 4096
      %570 = vsyncadd [#allocation5], %s569
      %s571 = sshll.u32 [#allocation6], 4
      %s572 = int_to_ptr.vmem [resolvable:$true] %s571
      %577 = dma.vmem_to_hbm [thread:$0]  %s572, 4096, %s6, [#allocation5], 256, 256, 16
    $region33: #{tpu_custom_call.1} parent=1 // pred_fallthru
      _
    // Predicated region
    $region34: #{tpu_custom_call.1} parent=1 // pred_check
      _
    $region35: #{tpu_custom_call.1} parent=1 // pred_check_branch
      %579 = sbr.rel (0) target = $region37
    $region36: #{tpu_custom_call.1} parent=1 // pred_region
      %580 = dma.done [#allocation5], 4096
    $region37: #{tpu_custom_call.1} parent=1 // pred_fallthru
      _
    %581 = vsyncpa [#allocation4], 1
    %582 = vsyncpa [#allocation5], 1

</llo_original>
